<compile_context>
chip_gen: v6e
topology: v6e:2x2x1
jax: 0.10.0
libtpu: 0.0.40
codegen_flags: <defaults>
</compile_context>

<pallas_src>
import jax
import jax.numpy as jnp
from jax.experimental import pallas as pl
from jax.experimental.pallas import tpu as pltpu


def latent_map_kernel(x_ref, w_ref, b_ref, o_ref):
    # x_ref: (B, H)      -- shared input
    # w_ref: (H, L*Z)    -- all layer weights packed along the lane axis
    # b_ref: (1, L*Z)    -- all layer biases packed along the lane axis
    # o_ref: (B, L*Z)    -- output, layer-major along the last dim
    x = x_ref[...]
    w = w_ref[...]
    b = b_ref[...]
    y = jnp.dot(x, w, preferred_element_type=jnp.float32) + b  # (B, L*Z) in f32
    o_ref[...] = y.astype(o_ref.dtype)


def latent_map(x, weights, biases):
    """x: (B, H); weights: (L, H, Z); biases: (L, Z) -> (B, L, Z)."""
    B, H = x.shape
    L, _, Z = weights.shape
    LZ = L * Z

    # Pack the L independent (H, Z) weight matrices side-by-side along the
    # output (lane) axis: W_packed[:, l*Z:(l+1)*Z] = weights[l].
    w_packed = jnp.transpose(weights, (1, 0, 2)).reshape(H, LZ)
    b_packed = biases.reshape(1, LZ)

    out_flat = pl.pallas_call(
        latent_map_kernel,
        out_shape=jax.ShapeDtypeStruct((B, LZ), x.dtype),
        # No grid: a single kernel invocation; every operand is one whole
        # resident VMEM block (no tiling / pipelining needed for ~9 KiB).
        in_specs=[
            pl.BlockSpec(memory_space=pltpu.MemorySpace.VMEM),  # x
            pl.BlockSpec(memory_space=pltpu.MemorySpace.VMEM),  # packed W
            pl.BlockSpec(memory_space=pltpu.MemorySpace.VMEM),  # packed b
        ],
        out_specs=pl.BlockSpec(memory_space=pltpu.MemorySpace.VMEM),
    )(x, w_packed, b_packed)

    # Layer-major flat layout -> (B, L, Z); pure reshape, no transpose.
    return out_flat.reshape(B, L, Z)


if __name__ == "__main__":
    # config: n_topic_num (L) = 4, decoder_hidden_size (H) = 32, n_z (Z) = 16
    B, H, Z, L = 2, 32, 16, 4

    key = jax.random.PRNGKey(0)
    kx, kw, kb = jax.random.split(key, 3)

    x = jax.random.normal(kx, (B, H), dtype=jnp.float32)
    # Deterministic "nn.Linear" parameters for the L layers.
    weights = jax.random.normal(kw, (L, H, Z), dtype=jnp.float32) * 0.05
    biases = jax.random.normal(kb, (L, Z), dtype=jnp.float32) * 0.05

    out = latent_map(x, weights, biases)
    out = jax.block_until_ready(out)

    # Reference (plain JAX) check of the forward semantics:
    # torch: topics[i] = Linear_i(title_context); stack along dim 1.
    ref = jnp.einsum("bh,lhz->blz", x, weights) + biases[None, :, :]
    assert out.shape == (B, L, Z)
    assert jnp.allclose(out, ref, atol=1e-5, rtol=1e-5)

    print("KERNEL_OK")
</pallas_src>

<mosaic_0001>
module attributes {stable_mosaic.version = 11 : i64} {
  func.func @latent_map_kernel(%arg0: memref<2x32xf32, #tpu.memory_space<vmem>>, %arg1: memref<32x64xf32, #tpu.memory_space<vmem>>, %arg2: memref<1x64xf32, #tpu.memory_space<vmem>>, %arg3: memref<2x64xf32, #tpu.memory_space<vmem>>) attributes {dimension_semantics = [], scalar_prefetch = 0 : i64, scratch_operands = 0 : i64, tpu.core_type = #tpu.core_type<tc>} {
    %c0 = arith.constant 0 : index
    %c0_0 = arith.constant 0 : index
    %0 = vector.load %arg0[%c0, %c0_0] : memref<2x32xf32, #tpu.memory_space<vmem>>, vector<2x32xf32>
    %c0_1 = arith.constant 0 : index
    %c0_2 = arith.constant 0 : index
    %1 = vector.load %arg1[%c0_1, %c0_2] : memref<32x64xf32, #tpu.memory_space<vmem>>, vector<32x64xf32>
    %c0_3 = arith.constant 0 : index
    %c0_4 = arith.constant 0 : index
    %2 = vector.load %arg2[%c0_3, %c0_4] : memref<1x64xf32, #tpu.memory_space<vmem>>, vector<1x64xf32>
    %cst = arith.constant dense<0.000000e+00> : vector<2x64xf32>
    %3 = tpu.matmul %0, %1, %cst {dimension_numbers = #tpu.dot_dimension_numbers<[1], [0], [0], [1], [0, 0, 1, 1], [], []>} : vector<2x32xf32>, vector<32x64xf32>, vector<2x64xf32> -> vector<2x64xf32>
    %4 = vector.broadcast %2 : vector<1x64xf32> to vector<2x64xf32>
    %5 = arith.addf %3, %4 : vector<2x64xf32>
    %c0_5 = arith.constant 0 : index
    %c0_6 = arith.constant 0 : index
    %6 = vector.load %arg3[%c0_5, %c0_6] : memref<2x64xf32, #tpu.memory_space<vmem>>, vector<2x64xf32>
    tpu.vector_store %arg3[%c0_5, %c0_6], %5 {strides = array<i32>} : memref<2x64xf32, #tpu.memory_space<vmem>>, vector<2x64xf32>,
    return
  }
}

</mosaic_0001>

<llo_original>
// kernel: tpu_custom_call.1
$region0: #{tpu_custom_call.1}
  #allocation0 [shape = 'u32[]', space=smem, size = 0x4, offset = 0x4, fixed_abs, tag = 'smem constant byte address 0x4 - core index']
  #allocation1 [shape = 'u32[144,128]{1,0:T(1,128)}', space=vmem, size = 0x12000, scoped, tag = 'internal scratch']
  %s0 = inlined_call_operand.hbm [shape: f32[2,32], index: 0, kind: input, shape index: {}]
  %s1 = inlined_call_operand.hbm [shape: f32[32,64], index: 1, kind: input, shape index: {}]
  %s2 = inlined_call_operand.vmem [shape: f32[1,64], index: 2, kind: input, shape index: {}]
  %s3 = inlined_call_operand.hbm [shape: f32[2,64], index: 3, kind: output, shape index: {}]
  %s4 = sld [smem:[#allocation0]]
  $region30: #{tpu_custom_call.1} parent=0
    _
  %s6 = ssub.s32 1, %s4
  %s7 = scalar_select 0, %s6, %s4
  $region1: #{tpu_custom_call.1} parent=0
    #allocation2 [shape = 'u8[1024]{0}', space=vmem, size = 0x400, scoped, tag = 'input window, operand 0, single buffered']
    #allocation3 [shape = 's32[1]{0}', space=sflag, size = 0x4, scoped, tag = 'scoped memory for tpu_custom_call.1']
    #allocation4 [shape = 's32[1]{0}', space=sflag, size = 0x4, scoped, tag = 'scoped memory for tpu_custom_call.1']
    #allocation5 [shape = 'u8[16384]{0}', space=vmem, size = 0x4000, scoped, tag = 'input window, operand 1, single buffered']
    #allocation6 [shape = 's32[1]{0}', space=sflag, size = 0x4, scoped, tag = 'scoped memory for tpu_custom_call.1']
    #allocation7 [shape = 'u8[1024]{0}', space=vmem, size = 0x400, scoped, tag = 'output window, operand 0, single buffered']
    %8 = vsyncpa [#allocation3], 0
    %9 = vsyncpa [#allocation6], 0
    %10 = vsyncpa [#allocation4], 0
    // Predicated region
    $region2: #{tpu_custom_call.1} parent=1 // pred_check
      _
    $region3: #{tpu_custom_call.1} parent=1 // pred_check_branch
      %12 = sbr.rel (0) target = $region5
    $region4: #{tpu_custom_call.1} parent=1 // pred_region
      %s14 = ssub.s32 32, 32
      %15 = vsyncadd [#allocation3], %s14
      %s17 = sshll.u32 [#allocation2], 4
      %s18 = int_to_ptr.vmem [resolvable:$true] %s17
      %20 = dma.hbm_to_vmem [thread:$0]  %s0, 32, %s18, [#allocation3]
    $region5: #{tpu_custom_call.1} parent=1 // pred_fallthru
      _
    // Predicated region
    $region6: #{tpu_custom_call.1} parent=1 // pred_check
      _
    $region7: #{tpu_custom_call.1} parent=1 // pred_check_branch
      %22 = sbr.rel (0) target = $region9
    $region8: #{tpu_custom_call.1} parent=1 // pred_region
      %s24 = ssub.s32 512, 512
      %25 = vsyncadd [#allocation6], %s24
      %s26 = sshll.u32 [#allocation5], 4
      %s27 = int_to_ptr.vmem [resolvable:$true] %s26
      %32 = dma.hbm_to_vmem [thread:$0]  %s1, 512, %s27, [#allocation6], 128, 128, 8
    $region9: #{tpu_custom_call.1} parent=1 // pred_fallthru
      _
    // Predicated region
    $region10: #{tpu_custom_call.1} parent=1 // pred_check
      _
    $region11: #{tpu_custom_call.1} parent=1 // pred_check_branch
      %34 = sbr.rel (0) target = $region13
    $region12: #{tpu_custom_call.1} parent=1 // pred_region
      _
    $region13: #{tpu_custom_call.1} parent=1 // pred_fallthru
      _
    // Predicated region
    $region14: #{tpu_custom_call.1} parent=1 // pred_check
      _
    $region15: #{tpu_custom_call.1} parent=1 // pred_check_branch
      %36 = sbr.rel (0) target = $region17
    $region16: #{tpu_custom_call.1} parent=1 // pred_region
      %37 = dma.done [#allocation3], 32
    $region17: #{tpu_custom_call.1} parent=1 // pred_fallthru
      _
    // Predicated region
    $region18: #{tpu_custom_call.1} parent=1 // pred_check
      _
    $region19: #{tpu_custom_call.1} parent=1 // pred_check_branch
      %39 = sbr.rel (0) target = $region21
    $region20: #{tpu_custom_call.1} parent=1 // pred_region
      %40 = dma.done [#allocation6], 512
    $region21: #{tpu_custom_call.1} parent=1 // pred_fallthru
      _
    %v41 = vld [vmem:[#allocation2] sm:$0x3]
    %v42 = vld [vmem:[#allocation5] sm:$0xff]
    %v43 = vld [vmem:[#allocation5 + $0x8] sm:$0xff]
    %v44 = vld [vmem:[#allocation5 + $0x10] sm:$0xff]
    %v45 = vld [vmem:[#allocation5 + $0x18] sm:$0xff]
    %v46 = vld [vmem:[%s2] sm:$0x1]
    %v48 = vlaneseq
    %v49 = vshrl.u32 %v48, 7
    %v50 = vsub.s32 0, %v49
    %v51 = vrot.slane %v46, %v50
    %vm53 = vcmask 261120
    %v55 = vsel %vm53, %v41, 0
    %57 = vmatprep.subr.mxu0 0.0
    %58 = vmatpush1.msra.mxu0 0.0
    %59 = vmatprep.subr.mxu0 0.0
    %60 = vmatpush1.msra.mxu0 0.0
    %61 = vmatprep.subr.mxu0 0.0
    %62 = vmatpush1.msra.mxu0 0.0
    %63 = vmatprep.subr.mxu0 0.0
    %64 = vmatpush1.msra.mxu0 0.0
    %65 = vmatprep.subr.mxu0 0.0
    %66 = vmatpush1.msra.mxu0 0.0
    %67 = vmatprep.subr.mxu0 0.0
    %68 = vmatpush1.msra.mxu0 0.0
    %69 = vmatprep.subr.mxu0 0.0
    %70 = vmatpush1.msra.mxu0 0.0
    %71 = vmatprep.subr.mxu0 0.0
    %72 = vmatpush1.msra.mxu0 0.0
    %73 = vmatprep.subr.mxu0 0.0
    %74 = vmatpush1.msra.mxu0 0.0
    %75 = vmatprep.subr.mxu0 0.0
    %76 = vmatpush1.msra.mxu0 0.0
    %77 = vmatprep.subr.mxu0 0.0
    %78 = vmatpush1.msra.mxu0 0.0
    %79 = vmatprep.subr.mxu0 0.0
    %80 = vmatpush1.msra.mxu0 0.0
    %81 = vmatprep.subr.mxu0 0.0
    %82 = vmatpush1.msra.mxu0 %v45
    %83 = vmatprep.subr.mxu0 0.0
    %84 = vmatpush1.msra.mxu0 %v44
    %85 = vmatprep.subr.mxu0 0.0
    %86 = vmatpush1.msra.mxu0 %v43
    %87 = vmatprep.subr.mxu0 0.0
    %88 = vmatpush1.msra.mxu0 %v42
    %89 = vmatprep.subr.mxu0 0.0
    %90 = vmatpush2.msra.mxu0 0.0
    %91 = vmatprep.subr.mxu0 0.0
    %92 = vmatpush2.msra.mxu0 0.0
    %93 = vmatprep.subr.mxu0 0.0
    %94 = vmatpush2.msra.mxu0 0.0
    %95 = vmatprep.subr.mxu0 0.0
    %96 = vmatpush2.msra.mxu0 0.0
    %97 = vmatprep.subr.mxu0 0.0
    %98 = vmatpush2.msra.mxu0 0.0
    %99 = vmatprep.subr.mxu0 0.0
    %100 = vmatpush2.msra.mxu0 0.0
    %101 = vmatprep.subr.mxu0 0.0
    %102 = vmatpush2.msra.mxu0 0.0
    %103 = vmatprep.subr.mxu0 0.0
    %104 = vmatpush2.msra.mxu0 0.0
    %105 = vmatprep.subr.mxu0 0.0
    %106 = vmatpush2.msra.mxu0 0.0
    %107 = vmatprep.subr.mxu0 0.0
    %108 = vmatpush2.msra.mxu0 0.0
    %109 = vmatprep.subr.mxu0 0.0
    %110 = vmatpush2.msra.mxu0 0.0
    %111 = vmatprep.subr.mxu0 0.0
    %112 = vmatpush2.msra.mxu0 0.0
    %113 = vmatprep.subr.mxu0 0.0
    %114 = vmatpush2.msra.mxu0 0.0
    %115 = vmatprep.subr.mxu0 0.0
    %116 = vmatpush2.msra.mxu0 0.0
    %117 = vmatprep.subr.mxu0 0.0
    %118 = vmatpush2.msra.mxu0 0.0
    %119 = vmatprep.subr.mxu0 0.0
    %120 = vmatpush2.msra.mxu0 0.0
    %121 = vmatprep.mubr.f32.mxu0 0.0
    %122 = vmatmul.mubr.f32.gmra.mxu0 %v55
    %v123 = vpop.f32.mrf.mxu0
    %v124 = vadd.f32 %v51, %v123
    %v125 = vpop.f32.mrf.mxu0
    %126 = vdwg.mxu0
    %vm127 = vcmask 517120
    %128 = vst.msk [vmem:[#allocation7] sm:$0x3] %vm127, %v124
    // Predicated region
    $region22: #{tpu_custom_call.1} parent=1 // pred_check
      _
    $region23: #{tpu_custom_call.1} parent=1 // pred_check_branch
      %130 = sbr.rel (0) target = $region25
    $region24: #{tpu_custom_call.1} parent=1 // pred_region
      %s132 = ssub.s32 32, 32
      %133 = vsyncadd [#allocation4], %s132
      %s135 = sshll.u32 [#allocation7], 4
      %s136 = int_to_ptr.vmem [resolvable:$true] %s135
      %138 = dma.vmem_to_hbm [thread:$0]  %s136, 32, %s3, [#allocation4]
    $region25: #{tpu_custom_call.1} parent=1 // pred_fallthru
      _
    // Predicated region
    $region26: #{tpu_custom_call.1} parent=1 // pred_check
      _
    $region27: #{tpu_custom_call.1} parent=1 // pred_check_branch
      %140 = sbr.rel (0) target = $region29
    $region28: #{tpu_custom_call.1} parent=1 // pred_region
      %141 = dma.done [#allocation4], 32
    $region29: #{tpu_custom_call.1} parent=1 // pred_fallthru
      _
    %142 = vsyncpa [#allocation3], 1
    %143 = vsyncpa [#allocation6], 1
    %144 = vsyncpa [#allocation4], 1

</llo_original>
